<compile_context>
chip_gen: v7x
topology: tpu7x:2x2x1
jax: 0.10.0
libtpu: 0.0.40
codegen_flags: <defaults>
</compile_context>

<pallas_src>
import math
from functools import partial

import jax
import jax.numpy as jnp
from jax import lax
from jax.experimental import pallas as pl
from jax.experimental.pallas import tpu as pltpu
import numpy as np

# Finite "minus infinity": under causal masking every query row keeps >= 1 key,
# so this is numerically equivalent to -inf masking + the torch NaN->0 fixup.
_NEG_INF = -1e30


# --------------------------- kernel 1: packed QKV projection ---------------------------

def qkv_proj_kernel(x_ref, wq_ref, bq_ref, wk_ref, bk_ref, wv_ref, bv_ref,
                    q_ref, k_ref, v_ref):
    """One grid step = one (batch, row-tile). Head-packed, lane-dense matmuls.
    wq/bq already carry the 1/sqrt(d_head) factor."""
    x = x_ref[0]                                                        # (Tr, D) bf16
    q = jnp.dot(x, wq_ref[...], preferred_element_type=jnp.float32) + bq_ref[...]
    k = jnp.dot(x, wk_ref[...], preferred_element_type=jnp.float32) + bk_ref[...]
    v = jnp.dot(x, wv_ref[...], preferred_element_type=jnp.float32) + bv_ref[...]
    q_ref[0] = q.astype(q_ref.dtype)
    k_ref[0] = k.astype(k_ref.dtype)
    v_ref[0] = v.astype(v_ref.dtype)


# ---------------- kernel 2: flash attention + fused packed output projection -----------

def flash_attn_out_kernel(q_ref, k_ref, v_ref, wo_ref, bo_ref, o_ref,
                          m_scr, l_scr, acc_scr,
                          *, n_heads, d_head, block_q, block_k):
    qi = pl.program_id(1)
    ki = pl.program_id(2)

    @pl.when(ki == 0)
    def _init():
        m_scr[...] = jnp.full_like(m_scr, _NEG_INF)
        l_scr[...] = jnp.zeros_like(l_scr)
        acc_scr[...] = jnp.zeros_like(acc_scr)

    # Skip kv blocks that lie entirely above the causal diagonal.
    @pl.when(ki <= qi)
    def _compute():
        q = q_ref[0]          # (Tq, H*Dh) bf16, pre-scaled by 1/sqrt(d_head)
        k = k_ref[0]          # (Tk, H*Dh) bf16
        v = v_ref[0]          # (Tk, H*Dh) bf16

        # Additive causal mask for this block pair (all-zero strictly below diagonal).
        row = qi * block_q + lax.broadcasted_iota(jnp.int32, (block_q, block_k), 0)
        col = ki * block_k + lax.broadcasted_iota(jnp.int32, (block_q, block_k), 1)
        mask_add = jnp.where(col > row, _NEG_INF, 0.0).astype(jnp.float32)

        # Only the SxS score / softmax / PV stage is per-head; Q/K/V/O stay packed.
        for h in range(n_heads):
            sl = slice(h * d_head, (h + 1) * d_head)
            qh, kh, vh = q[:, sl], k[:, sl], v[:, sl]
            s = lax.dot_general(qh, kh, (((1,), (1,)), ((), ())),
                                preferred_element_type=jnp.float32)   # (Tq, Tk)
            s = s + mask_add

            m_prev = m_scr[:, h:h + 1]
            m_new = jnp.maximum(m_prev, jnp.max(s, axis=-1, keepdims=True))
            alpha = jnp.exp(m_prev - m_new)
            p = jnp.exp(s - m_new)
            l_scr[:, h:h + 1] = alpha * l_scr[:, h:h + 1] + jnp.sum(p, -1, keepdims=True)
            acc_scr[:, sl] = alpha * acc_scr[:, sl] + jnp.dot(
                p.astype(v.dtype), vh, preferred_element_type=jnp.float32)
            m_scr[:, h:h + 1] = m_new

    # The diagonal block is the last one this q-tile needs: normalize + project.
    @pl.when(ki == qi)
    def _finalize():
        inv_l = pl.reciprocal(l_scr[...], approx=True)                 # (Tq, H)
        z = jnp.concatenate(
            [acc_scr[:, h * d_head:(h + 1) * d_head] * inv_l[:, h:h + 1]
             for h in range(n_heads)], axis=1).astype(wo_ref.dtype)    # (Tq, H*Dh)
        out = jnp.dot(z, wo_ref[...], preferred_element_type=jnp.float32) + bo_ref[...]
        o_ref[0] = out.astype(o_ref.dtype)


# ------------------------------------ wrapper ------------------------------------

def attention_forward(x, W_Q, b_Q, W_K, b_K, W_V, b_V, W_O, b_O,
                      *, block_q=128, block_r=256, compute_dtype=jnp.bfloat16):
    """Forward pass of the (weight-masked) GPT-2 attention block.
    Returns (B, S, D) float32 (== attn_out.sum(dim=2) in the PyTorch module)."""
    B, S, D = x.shape
    H, _, Dh = W_Q.shape
    HDh = H * Dh
    inv_sqrt_dh = 1.0 / math.sqrt(Dh)

    # Pack head-major weights into lane-dense 2-D matrices (done once, outside kernels).
    wq = (jnp.transpose(W_Q, (1, 0, 2)).reshape(D, HDh) * inv_sqrt_dh).astype(compute_dtype)
    wk = jnp.transpose(W_K, (1, 0, 2)).reshape(D, HDh).astype(compute_dtype)
    wv = jnp.transpose(W_V, (1, 0, 2)).reshape(D, HDh).astype(compute_dtype)
    wo = W_O.reshape(HDh, D).astype(compute_dtype)
    bq = (b_Q.reshape(1, HDh) * inv_sqrt_dh).astype(jnp.float32)
    bk = b_K.reshape(1, HDh).astype(jnp.float32)
    bv = b_V.reshape(1, HDh).astype(jnp.float32)
    bo = b_O.reshape(1, D).astype(jnp.float32)
    xc = x.astype(compute_dtype)

    # Tile sizes (second-to-last block dims are multiples of 8 or the full dim).
    blk_r = min(block_r, S)
    if S % blk_r != 0:
        blk_r = S
    blk = min(block_q, S)
    if S % blk != 0:
        blk = S
    n_t = S // blk

    # TODO(synk): single-buffer the grid-invariant weight inputs (pl.Buffered(1));
    # kept at the default pipelining for compile safety — their constant index_map
    # already means they are DMA'd only once.
    cparams1 = pltpu.CompilerParams(
        dimension_semantics=("parallel", "parallel"),
        vmem_limit_bytes=64 * 1024 * 1024)
    cparams2 = pltpu.CompilerParams(
        dimension_semantics=("parallel", "parallel", "arbitrary"),
        vmem_limit_bytes=64 * 1024 * 1024)

    # ---- kernel 1: head-packed QKV projection (q pre-scaled by 1/sqrt(Dh)) ----
    qkv_struct = jax.ShapeDtypeStruct((B, S, HDh), compute_dtype)
    q, k, v = pl.pallas_call(
        qkv_proj_kernel,
        out_shape=(qkv_struct, qkv_struct, qkv_struct),
        grid=(B, S // blk_r),
        in_specs=[
            pl.BlockSpec((1, blk_r, D), lambda b, r: (b, r, 0)),   # x row tile
            pl.BlockSpec((D, HDh), lambda b, r: (0, 0)),           # packed W_Q (scaled)
            pl.BlockSpec((1, HDh), lambda b, r: (0, 0)),           # packed b_Q (scaled)
            pl.BlockSpec((D, HDh), lambda b, r: (0, 0)),           # packed W_K
            pl.BlockSpec((1, HDh), lambda b, r: (0, 0)),           # packed b_K
            pl.BlockSpec((D, HDh), lambda b, r: (0, 0)),           # packed W_V
            pl.BlockSpec((1, HDh), lambda b, r: (0, 0)),           # packed b_V
        ],
        out_specs=(
            pl.BlockSpec((1, blk_r, HDh), lambda b, r: (b, r, 0)),
            pl.BlockSpec((1, blk_r, HDh), lambda b, r: (b, r, 0)),
            pl.BlockSpec((1, blk_r, HDh), lambda b, r: (b, r, 0)),
        ),
        compiler_params=cparams1,
    )(xc, wq, bq, wk, bk, wv, bv)

    # ---- kernel 2: flash attention (online softmax) + fused output projection ----
    out = pl.pallas_call(
        partial(flash_attn_out_kernel, n_heads=H, d_head=Dh,
                block_q=blk, block_k=blk),
        out_shape=jax.ShapeDtypeStruct((B, S, D), jnp.float32),
        grid=(B, n_t, n_t),
        in_specs=[
            pl.BlockSpec((1, blk, HDh), lambda b, i, j: (b, i, 0)),   # q tile
            pl.BlockSpec((1, blk, HDh), lambda b, i, j: (b, j, 0)),   # k tile
            pl.BlockSpec((1, blk, HDh), lambda b, i, j: (b, j, 0)),   # v tile
            pl.BlockSpec((HDh, D), lambda b, i, j: (0, 0)),           # packed W_O
            pl.BlockSpec((1, D), lambda b, i, j: (0, 0)),             # b_O
        ],
        out_specs=pl.BlockSpec((1, blk, D), lambda b, i, j: (b, i, 0)),
        scratch_shapes=[
            pltpu.VMEM((blk, H), jnp.float32),     # running row-max per head
            pltpu.VMEM((blk, H), jnp.float32),     # running denom per head
            pltpu.VMEM((blk, HDh), jnp.float32),   # packed un-normalized PV accum
        ],
        compiler_params=cparams2,
    )(q, k, v, wo, bo)
    return out


# ---------------- glue: weight-mask construction (plain JAX) ----------------

def make_partly_differentiable_mask(n_heads, unfrozen_heads, n_extra_dims):
    """Mirrors the PyTorch helper: returns (baseline, frozen) float arrays of
    shape (n_heads, 1, ..., 1); forward uses baseline + frozen * mask."""
    frozen = jnp.zeros((n_heads,), dtype=bool).at[jnp.asarray(unfrozen_heads)].set(True)
    baseline = ~frozen
    shape = (n_heads,) + (1,) * n_extra_dims
    return baseline.astype(jnp.float32).reshape(shape), frozen.astype(jnp.float32).reshape(shape)


def apply_weight_masks(W, mask, baseline, frozen):
    return W * (baseline + frozen * mask)


# ---------------- pure-JAX reference (mirrors the PyTorch forward) ----------------

def reference_forward(x, W_Q, b_Q, W_K, b_K, W_V, b_V, W_O, b_O):
    H = W_Q.shape[0]
    q = jnp.einsum('bqd,hde->bqhe', x, W_Q) + b_Q
    k = jnp.einsum('bkd,hde->bkhe', x, W_K) + b_K
    scores = jnp.einsum('bqhe,bkhe->bhqk', q, k) / math.sqrt(W_Q.shape[-1])
    S = scores.shape[-1]
    mask = jnp.triu(jnp.ones((S, S), dtype=bool), k=1)
    scores = jnp.where(mask, -jnp.inf, scores)
    pattern = jax.nn.softmax(scores, axis=-1)
    pattern = jnp.where(jnp.isnan(pattern), 0.0, pattern)
    v = jnp.einsum('bkd,hde->bkhe', x, W_V) + b_V
    z = jnp.einsum('bhqk,bkhe->bqhe', pattern, v)
    attn_out = jnp.einsum('bqhe,hed->bqhd', z, W_O) + b_O / H
    return attn_out.sum(axis=2)


if __name__ == "__main__":
    # Small config consistent with the module (scaled-down GPT-2 attention).
    # seq=16 with block 8 exercises the multi-tile flash path (diagonal, below-
    # diagonal, and skipped above-diagonal kv blocks).
    batch, seq = 2, 16
    d_model, n_heads, d_head = 32, 4, 8
    init_range = 0.02
    mask_heads = [0, 2]   # heads whose weight masks are "unfrozen" (learnable)

    key = jax.random.PRNGKey(0)
    ks = jax.random.split(key, 10)

    W_Q = init_range * jax.random.normal(ks[0], (n_heads, d_model, d_head), jnp.float32)
    W_K = init_range * jax.random.normal(ks[1], (n_heads, d_model, d_head), jnp.float32)
    W_V = init_range * jax.random.normal(ks[2], (n_heads, d_model, d_head), jnp.float32)
    W_O = init_range * jax.random.normal(ks[3], (n_heads, d_head, d_model), jnp.float32)
    b_Q = jnp.zeros((n_heads, d_head), jnp.float32)
    b_K = jnp.zeros((n_heads, d_head), jnp.float32)
    b_V = jnp.zeros((n_heads, d_head), jnp.float32)
    b_O = jnp.zeros((d_model,), jnp.float32)

    # weight masks: ones at init, perturbed on the unfrozen heads (deterministic)
    mQ = jnp.ones_like(W_Q).at[jnp.asarray(mask_heads)].mul(
        0.5 + jax.random.uniform(ks[4], (len(mask_heads), d_model, d_head)))
    mK = jnp.ones_like(W_K).at[jnp.asarray(mask_heads)].mul(
        0.5 + jax.random.uniform(ks[5], (len(mask_heads), d_model, d_head)))
    mV = jnp.ones_like(W_V).at[jnp.asarray(mask_heads)].mul(
        0.5 + jax.random.uniform(ks[6], (len(mask_heads), d_model, d_head)))
    mO = jnp.ones_like(W_O).at[jnp.asarray(mask_heads)].mul(
        0.5 + jax.random.uniform(ks[7], (len(mask_heads), d_head, d_model)))

    base, froz = make_partly_differentiable_mask(n_heads, mask_heads, 2)
    W_Q_eff = apply_weight_masks(W_Q, mQ, base, froz)
    W_K_eff = apply_weight_masks(W_K, mK, base, froz)
    W_V_eff = apply_weight_masks(W_V, mV, base, froz)
    W_O_eff = apply_weight_masks(W_O, mO, base, froz)

    x = jax.random.normal(ks[8], (batch, seq, d_model), jnp.float32)

    out = attention_forward(x, W_Q_eff, b_Q, W_K_eff, b_K, W_V_eff, b_V,
                            W_O_eff, b_O, block_q=8, block_r=8)
    out = jax.block_until_ready(out)

    ref = reference_forward(x, W_Q_eff, b_Q, W_K_eff, b_K, W_V_eff, b_V, W_O_eff, b_O)
    # bf16 matmul inputs + approx reciprocal -> loosened tolerance (f32 accumulation
    # and f32 softmax statistics keep the error well inside these bounds).
    np.testing.assert_allclose(np.asarray(out), np.asarray(ref), rtol=2e-2, atol=2e-3)

    print("KERNEL_OK")
</pallas_src>

<mosaic_0001>
module attributes {stable_mosaic.version = 11 : i64} {
  func.func @qkv_proj_kernel(%arg0: i32, %arg1: i32, %arg2: memref<1x8x32xbf16, #tpu.memory_space<vmem>>, %arg3: memref<32x32xbf16, #tpu.memory_space<vmem>>, %arg4: memref<1x32xf32, #tpu.memory_space<vmem>>, %arg5: memref<32x32xbf16, #tpu.memory_space<vmem>>, %arg6: memref<1x32xf32, #tpu.memory_space<vmem>>, %arg7: memref<32x32xbf16, #tpu.memory_space<vmem>>, %arg8: memref<1x32xf32, #tpu.memory_space<vmem>>, %arg9: memref<1x8x32xbf16, #tpu.memory_space<vmem>>, %arg10: memref<1x8x32xbf16, #tpu.memory_space<vmem>>, %arg11: memref<1x8x32xbf16, #tpu.memory_space<vmem>>) attributes {dimension_semantics = [#tpu.dimension_semantics<parallel>, #tpu.dimension_semantics<parallel>], iteration_bounds = array<i64: 2, 2>, scalar_prefetch = 0 : i64, scratch_operands = 0 : i64, tpu.core_type = #tpu.core_type<tc>, window_params = [{transform_indices = @transform_0, window_bounds = array<i64: 1, 8, 32>}, {pipeline_mode = #tpu.pipeline_mode<synchronous>, transform_indices = @transform_1, window_bounds = array<i64: 32, 32>}, {pipeline_mode = #tpu.pipeline_mode<synchronous>, transform_indices = @transform_2, window_bounds = array<i64: 1, 32>}, {pipeline_mode = #tpu.pipeline_mode<synchronous>, transform_indices = @transform_3, window_bounds = array<i64: 32, 32>}, {pipeline_mode = #tpu.pipeline_mode<synchronous>, transform_indices = @transform_4, window_bounds = array<i64: 1, 32>}, {pipeline_mode = #tpu.pipeline_mode<synchronous>, transform_indices = @transform_5, window_bounds = array<i64: 32, 32>}, {pipeline_mode = #tpu.pipeline_mode<synchronous>, transform_indices = @transform_6, window_bounds = array<i64: 1, 32>}, {transform_indices = @transform_7, window_bounds = array<i64: 1, 8, 32>}, {transform_indices = @transform_8, window_bounds = array<i64: 1, 8, 32>}, {transform_indices = @transform_9, window_bounds = array<i64: 1, 8, 32>}]} {
    %c0 = arith.constant 0 : index
    %c0_0 = arith.constant 0 : index
    %c0_1 = arith.constant 0 : index
    %0 = vector.load %arg2[%c0, %c0_0, %c0_1] : memref<1x8x32xbf16, #tpu.memory_space<vmem>>, vector<1x8x32xbf16>
    %1 = vector.shape_cast %0 : vector<1x8x32xbf16> to vector<8x32xbf16>
    %c0_2 = arith.constant 0 : index
    %c0_3 = arith.constant 0 : index
    %2 = vector.load %arg3[%c0_2, %c0_3] : memref<32x32xbf16, #tpu.memory_space<vmem>>, vector<32x32xbf16>
    %cst = arith.constant dense<0.000000e+00> : vector<8x32xf32>
    %3 = tpu.matmul %1, %2, %cst {dimension_numbers = #tpu.dot_dimension_numbers<[1], [0], [0], [1], [0, 0, 1, 1], [], []>} : vector<8x32xbf16>, vector<32x32xbf16>, vector<8x32xf32> -> vector<8x32xf32>
    %c0_4 = arith.constant 0 : index
    %c0_5 = arith.constant 0 : index
    %4 = vector.load %arg4[%c0_4, %c0_5] : memref<1x32xf32, #tpu.memory_space<vmem>>, vector<1x32xf32>
    %5 = vector.broadcast %4 : vector<1x32xf32> to vector<8x32xf32>
    %6 = arith.addf %3, %5 : vector<8x32xf32>
    %c0_6 = arith.constant 0 : index
    %c0_7 = arith.constant 0 : index
    %7 = vector.load %arg5[%c0_6, %c0_7] : memref<32x32xbf16, #tpu.memory_space<vmem>>, vector<32x32xbf16>
    %cst_8 = arith.constant dense<0.000000e+00> : vector<8x32xf32>
    %8 = tpu.matmul %1, %7, %cst_8 {dimension_numbers = #tpu.dot_dimension_numbers<[1], [0], [0], [1], [0, 0, 1, 1], [], []>} : vector<8x32xbf16>, vector<32x32xbf16>, vector<8x32xf32> -> vector<8x32xf32>
    %c0_9 = arith.constant 0 : index
    %c0_10 = arith.constant 0 : index
    %9 = vector.load %arg6[%c0_9, %c0_10] : memref<1x32xf32, #tpu.memory_space<vmem>>, vector<1x32xf32>
    %10 = vector.broadcast %9 : vector<1x32xf32> to vector<8x32xf32>
    %11 = arith.addf %8, %10 : vector<8x32xf32>
    %c0_11 = arith.constant 0 : index
    %c0_12 = arith.constant 0 : index
    %12 = vector.load %arg7[%c0_11, %c0_12] : memref<32x32xbf16, #tpu.memory_space<vmem>>, vector<32x32xbf16>
    %cst_13 = arith.constant dense<0.000000e+00> : vector<8x32xf32>
    %13 = tpu.matmul %1, %12, %cst_13 {dimension_numbers = #tpu.dot_dimension_numbers<[1], [0], [0], [1], [0, 0, 1, 1], [], []>} : vector<8x32xbf16>, vector<32x32xbf16>, vector<8x32xf32> -> vector<8x32xf32>
    %c0_14 = arith.constant 0 : index
    %c0_15 = arith.constant 0 : index
    %14 = vector.load %arg8[%c0_14, %c0_15] : memref<1x32xf32, #tpu.memory_space<vmem>>, vector<1x32xf32>
    %15 = vector.broadcast %14 : vector<1x32xf32> to vector<8x32xf32>
    %16 = arith.addf %13, %15 : vector<8x32xf32>
    %17 = arith.truncf %6 : vector<8x32xf32> to vector<8x32xbf16>
    %c0_16 = arith.constant 0 : index
    %c0_17 = arith.constant 0 : index
    %c0_18 = arith.constant 0 : index
    %18 = vector.load %arg9[%c0_16, %c0_17, %c0_18] : memref<1x8x32xbf16, #tpu.memory_space<vmem>>, vector<1x8x32xbf16>
    %19 = vector.shape_cast %18 : vector<1x8x32xbf16> to vector<8x32xbf16>
    %20 = vector.shape_cast %17 : vector<8x32xbf16> to vector<1x8x32xbf16>
    tpu.vector_store %arg9[%c0_16, %c0_17, %c0_18], %20 {strides = array<i32>} : memref<1x8x32xbf16, #tpu.memory_space<vmem>>, vector<1x8x32xbf16>,
    %21 = arith.truncf %11 : vector<8x32xf32> to vector<8x32xbf16>
    %c0_19 = arith.constant 0 : index
    %c0_20 = arith.constant 0 : index
    %c0_21 = arith.constant 0 : index
    %22 = vector.load %arg10[%c0_19, %c0_20, %c0_21] : memref<1x8x32xbf16, #tpu.memory_space<vmem>>, vector<1x8x32xbf16>
    %23 = vector.shape_cast %22 : vector<1x8x32xbf16> to vector<8x32xbf16>
    %24 = vector.shape_cast %21 : vector<8x32xbf16> to vector<1x8x32xbf16>
    tpu.vector_store %arg10[%c0_19, %c0_20, %c0_21], %24 {strides = array<i32>} : memref<1x8x32xbf16, #tpu.memory_space<vmem>>, vector<1x8x32xbf16>,
    %25 = arith.truncf %16 : vector<8x32xf32> to vector<8x32xbf16>
    %c0_22 = arith.constant 0 : index
    %c0_23 = arith.constant 0 : index
    %c0_24 = arith.constant 0 : index
    %26 = vector.load %arg11[%c0_22, %c0_23, %c0_24] : memref<1x8x32xbf16, #tpu.memory_space<vmem>>, vector<1x8x32xbf16>
    %27 = vector.shape_cast %26 : vector<1x8x32xbf16> to vector<8x32xbf16>
    %28 = vector.shape_cast %25 : vector<8x32xbf16> to vector<1x8x32xbf16>
    tpu.vector_store %arg11[%c0_22, %c0_23, %c0_24], %28 {strides = array<i32>} : memref<1x8x32xbf16, #tpu.memory_space<vmem>>, vector<1x8x32xbf16>,
    return
  }
  func.func @transform_0(%arg0: i32, %arg1: i32) -> (i32, i32, i32) {
    %c0_i32 = arith.constant 0 : i32
    %c0_i32_0 = arith.constant 0 : i32
    return %arg0, %arg1, %c0_i32 : i32, i32, i32
  }
  func.func @transform_1(%arg0: i32, %arg1: i32) -> (i32, i32) {
    %c0_i32 = arith.constant 0 : i32
    %c0_i32_0 = arith.constant 0 : i32
    %c0_i32_1 = arith.constant 0 : i32
    return %c0_i32, %c0_i32_0 : i32, i32
  }
  func.func @transform_2(%arg0: i32, %arg1: i32) -> (i32, i32) {
    %c0_i32 = arith.constant 0 : i32
    %c0_i32_0 = arith.constant 0 : i32
    %c0_i32_1 = arith.constant 0 : i32
    return %c0_i32, %c0_i32_0 : i32, i32
  }
  func.func @transform_3(%arg0: i32, %arg1: i32) -> (i32, i32) {
    %c0_i32 = arith.constant 0 : i32
    %c0_i32_0 = arith.constant 0 : i32
    %c0_i32_1 = arith.constant 0 : i32
    return %c0_i32, %c0_i32_0 : i32, i32
  }
  func.func @transform_4(%arg0: i32, %arg1: i32) -> (i32, i32) {
    %c0_i32 = arith.constant 0 : i32
    %c0_i32_0 = arith.constant 0 : i32
    %c0_i32_1 = arith.constant 0 : i32
    return %c0_i32, %c0_i32_0 : i32, i32
  }
  func.func @transform_5(%arg0: i32, %arg1: i32) -> (i32, i32) {
    %c0_i32 = arith.constant 0 : i32
    %c0_i32_0 = arith.constant 0 : i32
    %c0_i32_1 = arith.constant 0 : i32
    return %c0_i32, %c0_i32_0 : i32, i32
  }
  func.func @transform_6(%arg0: i32, %arg1: i32) -> (i32, i32) {
    %c0_i32 = arith.constant 0 : i32
    %c0_i32_0 = arith.constant 0 : i32
    %c0_i32_1 = arith.constant 0 : i32
    return %c0_i32, %c0_i32_0 : i32, i32
  }
  func.func @transform_7(%arg0: i32, %arg1: i32) -> (i32, i32, i32) {
    %c0_i32 = arith.constant 0 : i32
    %c0_i32_0 = arith.constant 0 : i32
    return %arg0, %arg1, %c0_i32 : i32, i32, i32
  }
  func.func @transform_8(%arg0: i32, %arg1: i32) -> (i32, i32, i32) {
    %c0_i32 = arith.constant 0 : i32
    %c0_i32_0 = arith.constant 0 : i32
    return %arg0, %arg1, %c0_i32 : i32, i32, i32
  }
  func.func @transform_9(%arg0: i32, %arg1: i32) -> (i32, i32, i32) {
    %c0_i32 = arith.constant 0 : i32
    %c0_i32_0 = arith.constant 0 : i32
    return %arg0, %arg1, %c0_i32 : i32, i32, i32
  }
}

</mosaic_0001>

<llo_original>
// kernel: tpu_custom_call.1
$region0: #{tpu_custom_call.1}
  #allocation0 [shape = 'u32[]', space=smem, size = 0x4, offset = 0x4, fixed_abs, tag = 'smem constant byte address 0x4 - core index']
  #allocation1 [shape = 'u32[144,128]{1,0:T(1,128)}', space=vmem, size = 0x12000, scoped, tag = 'internal scratch']
  %s0 = inlined_call_operand.hbm [shape: bf16[2,16,32], index: 0, kind: input, shape index: {}]
  %s1 = inlined_call_operand.hbm [shape: bf16[32,32], index: 1, kind: input, shape index: {}]
  %s2 = inlined_call_operand.hbm [shape: f32[1,32], index: 2, kind: input, shape index: {}]
  %s3 = inlined_call_operand.hbm [shape: bf16[32,32], index: 3, kind: input, shape index: {}]
  %s4 = inlined_call_operand.hbm [shape: f32[1,32], index: 4, kind: input, shape index: {}]
  %s5 = inlined_call_operand.hbm [shape: bf16[32,32], index: 5, kind: input, shape index: {}]
  %s6 = inlined_call_operand.hbm [shape: f32[1,32], index: 6, kind: input, shape index: {}]
  %s7 = inlined_call_operand.hbm [shape: bf16[2,16,32], index: 7, kind: output, shape index: {0}]
  %s8 = inlined_call_operand.hbm [shape: bf16[2,16,32], index: 8, kind: output, shape index: {1}]
  %s9 = inlined_call_operand.hbm [shape: bf16[2,16,32], index: 9, kind: output, shape index: {2}]
  %10 = xla_tuple %s7, %s8, %s9
  %s11 = sld [smem:[#allocation0]]
  $region105: #{tpu_custom_call.1} parent=0
    _
  %s13 = ssub.s32 1, %s11
  %s14 = scalar_select 0, %s13, %s11
  $region1: #{tpu_custom_call.1} parent=0
    #allocation2 [shape = 'u8[4096]{0}', space=vmem, size = 0x1000, scoped, tag = 'input window, operand 0']
    #allocation3 [shape = 's32[2]{0}', space=sflag, size = 0x8, scoped, tag = 'scoped memory for tpu_custom_call.1']
    #allocation4 [shape = 's32[2]{0}', space=sflag, size = 0x8, scoped, tag = 'scoped memory for tpu_custom_call.1']
    #allocation5 [shape = 'u8[8192]{0}', space=vmem, size = 0x2000, scoped, tag = 'input window, operand 1, single buffered']
    #allocation6 [shape = 's32[1]{0}', space=sflag, size = 0x4, scoped, tag = 'scoped memory for tpu_custom_call.1']
    #allocation7 [shape = 'u8[512]{0}', space=vmem, size = 0x400, scoped, tag = 'input window, operand 2, single buffered']
    #allocation8 [shape = 'u8[8192]{0}', space=vmem, size = 0x2000, scoped, tag = 'input window, operand 3, single buffered']
    #allocation9 [shape = 's32[1]{0}', space=sflag, size = 0x4, scoped, tag = 'scoped memory for tpu_custom_call.1']
    #allocation10 [shape = 'u8[512]{0}', space=vmem, size = 0x400, scoped, tag = 'input window, operand 4, single buffered']
    #allocation11 [shape = 'u8[8192]{0}', space=vmem, size = 0x2000, scoped, tag = 'input window, operand 5, single buffered']
    #allocation12 [shape = 's32[1]{0}', space=sflag, size = 0x4, scoped, tag = 'scoped memory for tpu_custom_call.1']
    #allocation13 [shape = 'u8[512]{0}', space=vmem, size = 0x400, scoped, tag = 'input window, operand 6, single buffered']
    #allocation14 [shape = 'u8[4096]{0}', space=vmem, size = 0x1000, scoped, tag = 'output window, operand 0']
    #allocation15 [shape = 'u8[4096]{0}', space=vmem, size = 0x1000, scoped, tag = 'output window, operand 1']
    #allocation16 [shape = 's32[2]{0}', space=sflag, size = 0x8, scoped, tag = 'scoped memory for tpu_custom_call.1']
    #allocation17 [shape = 'u8[4096]{0}', space=vmem, size = 0x1000, scoped, tag = 'output window, operand 2']
    %15 = vsyncpa [#allocation3], 0
    %s16 = scalar_lea.sflag [#allocation3], 1
    %17 = vsyncpa %s16, 0
    %18 = vsyncpa [#allocation6], 0
    %19 = vsyncpa [#allocation9], 0
    %20 = vsyncpa [#allocation12], 0
    %21 = vsyncpa [#allocation4], 0
    %s22 = scalar_lea.sflag [#allocation4], 1
    %23 = vsyncpa %s22, 0
    %24 = vsyncpa [#allocation16], 0
    %s25 = scalar_lea.sflag [#allocation16], 1
    %26 = vsyncpa %s25, 0
    loop: start=0, step=1, limit=6
    $region2: #{tpu_custom_call.1} parent=1 // loop_pre_header
      _
    $region3: #{tpu_custom_call.1} parent=1 // loop_header
      %s28 = sphi 0, %s32
      %p29 = scmp.ge.s32.totalorder %s28, 6
      %s35 = sphi 0, %s47
      %s36 = sphi 0, %s43
      %s37 = sphi 0, %s35
      %s38 = sphi 0, %s36
      %s39 = sphi 0, %s37
      %s40 = sphi 0, %s38
      %s52 = sphi 0, %s54
      %s55 = sphi 0, %s52
      %s56 = sphi 0, %s55
      %s72 = sphi 0, %s56
      %s76 = sphi 0, %s76
      %s78 = sphi 0, %s76
      %s79 = sphi 0, %s78
      %s93 = sphi 0, %s79
      %s97 = sphi 0, %s97
      %s99 = sphi 0, %s97
      %s100 = sphi 0, %s99
      %s114 = sphi 0, %s100
      %s118 = sphi 0, %s118
      %s120 = sphi 0, %s118
      %s121 = sphi 0, %s120
      %s135 = sphi 0, %s121
      %s139 = sphi 0, %s139
      %s141 = sphi 0, %s139
      %s142 = sphi 0, %s141
      %s156 = sphi 0, %s142
      %s160 = sphi 0, %s160
      %s162 = sphi 0, %s160
      %s163 = sphi 0, %s162
      %s177 = sphi 0, %s163
      %s181 = sphi 0, %s181
      %s183 = sphi 0, %s181
      %s184 = sphi 0, %s183
      %s198 = sphi 0, %s184
      %s206 = sphi 0, %s208
      %s209 = sphi 0, %s206
      %s210 = sphi 0, %s209
      %s226 = sphi 0, %s210
      %s234 = sphi 0, %s236
      %s237 = sphi 0, %s234
      %s238 = sphi 0, %s237
      %s254 = sphi 0, %s238
      %s262 = sphi 0, %s264
      %s265 = sphi 0, %s262
      %s266 = sphi 0, %s265
      %s282 = sphi 0, %s266
    $region4: #{tpu_custom_call.1} parent=1 // loop_header_branch
      %31 = sbr.rel (%p29) target = $region8
    $region5: #{tpu_custom_call.1} parent=1 // loop_body
      %s33 = ssub.s32 %s28, 1
      %s34 = ssub.s32 %s28, 2
      %s41 = sadd.s32 1, %s36
      %p42 = scmp.ge.s32.totalorder %s41, 2
      %s43 = scalar_select %p42, 0, %s41
      %s44 = sadd.s32 1, %s35
      %s45 = scalar_select %p42, %s44, %s35
      %p46 = scmp.ge.s32.totalorder %s45, 2
      %s47 = scalar_select %p46, 0, %s45
      %s48 = ssub.s32 %s35, %s47
      %s49 = ssub.s32 %s36, %s43
      %s50 = sor.u32 %s48, %s49
      %p51 = scmp.eq.s32.totalorder %s50, 0
      %s53 = sadd.s32 %s52, 1
      %s54 = scalar_select %p51, %s52, %s53
      %p57 = pneg %p51
      %p58 = scmp.eq.s32.totalorder %s28, 3
      %p59 = por %p57, %p58
      %p60 = scmp.ne.s32.totalorder %s52, %s55
      %p61 = scmp.eq.s32.totalorder %s28, 0
      %p62 = por %p60, %p61
      %p63 = scmp.ne.s32.totalorder %s52, %s55
      %p64 = scmp.eq.s32.totalorder %s33, 3
      %p65 = por %p63, %p64
      %p66 = scmp.ne.s32.totalorder %s55, %s56
      %p67 = scmp.eq.s32.totalorder %s33, 0
      %p68 = por %p66, %p67
      %p69 = scmp.ne.s32.totalorder %s55, %s56
      %p70 = scmp.eq.s32.totalorder %s34, 3
      %p71 = por %p69, %p70
      %p73 = scmp.ne.s32.totalorder %s56, %s72
      %p74 = scmp.eq.s32.totalorder %s34, 0
      %p75 = por %p73, %p74
      %s77 = sadd.s32 %s76, 1
      %p80 = scmp.eq.s32.totalorder %s28, 3
      %p81 = scmp.ne.s32.totalorder %s76, %s78
      %p82 = scmp.eq.s32.totalorder %s28, 0
      %p83 = por %p81, %p82
      %p84 = scmp.ne.s32.totalorder %s76, %s78
      %p85 = scmp.eq.s32.totalorder %s33, 3
      %p86 = por %p84, %p85
      %p87 = scmp.ne.s32.totalorder %s78, %s79
      %p88 = scmp.eq.s32.totalorder %s33, 0
      %p89 = por %p87, %p88
      %p90 = scmp.ne.s32.totalorder %s78, %s79
      %p91 = scmp.eq.s32.totalorder %s34, 3
      %p92 = por %p90, %p91
      %p94 = scmp.ne.s32.totalorder %s79, %s93
      %p95 = scmp.eq.s32.totalorder %s34, 0
      %p96 = por %p94, %p95
      %s98 = sadd.s32 %s97, 1
      %p101 = scmp.eq.s32.totalorder %s28, 3
      %p102 = scmp.ne.s32.totalorder %s97, %s99
      %p103 = scmp.eq.s32.totalorder %s28, 0
      %p104 = por %p102, %p103
      %p105 = scmp.ne.s32.totalorder %s97, %s99
      %p106 = scmp.eq.s32.totalorder %s33, 3
      %p107 = por %p105, %p106
      %p108 = scmp.ne.s32.totalorder %s99, %s100
      %p109 = scmp.eq.s32.totalorder %s33, 0
      %p110 = por %p108, %p109
      %p111 = scmp.ne.s32.totalorder %s99, %s100
      %p112 = scmp.eq.s32.totalorder %s34, 3
      %p113 = por %p111, %p112
      %p115 = scmp.ne.s32.totalorder %s100, %s114
      %p116 = scmp.eq.s32.totalorder %s34, 0
      %p117 = por %p115, %p116
      %s119 = sadd.s32 %s118, 1
      %p122 = scmp.eq.s32.totalorder %s28, 3
      %p123 = scmp.ne.s32.totalorder %s118, %s120
      %p124 = scmp.eq.s32.totalorder %s28, 0
      %p125 = por %p123, %p124
      %p126 = scmp.ne.s32.totalorder %s118, %s120
      %p127 = scmp.eq.s32.totalorder %s33, 3
      %p128 = por %p126, %p127
      %p129 = scmp.ne.s32.totalorder %s120, %s121
      %p130 = scmp.eq.s32.totalorder %s33, 0
      %p131 = por %p129, %p130
      %p132 = scmp.ne.s32.totalorder %s120, %s121
      %p133 = scmp.eq.s32.totalorder %s34, 3
      %p134 = por %p132, %p133
      %p136 = scmp.ne.s32.totalorder %s121, %s135
      %p137 = scmp.eq.s32.totalorder %s34, 0
      %p138 = por %p136, %p137
      %s140 = sadd.s32 %s139, 1
      %p143 = scmp.eq.s32.totalorder %s28, 3
      %p144 = scmp.ne.s32.totalorder %s139, %s141
      %p145 = scmp.eq.s32.totalorder %s28, 0
      %p146 = por %p144, %p145
      %p147 = scmp.ne.s32.totalorder %s139, %s141
      %p148 = scmp.eq.s32.totalorder %s33, 3
      %p149 = por %p147, %p148
      %p150 = scmp.ne.s32.totalorder %s141, %s142
      %p151 = scmp.eq.s32.totalorder %s33, 0
      %p152 = por %p150, %p151
      %p153 = scmp.ne.s32.totalorder %s141, %s142
      %p154 = scmp.eq.s32.totalorder %s34, 3
      %p155 = por %p153, %p154
      %p157 = scmp.ne.s32.totalorder %s142, %s156
      %p158 = scmp.eq.s32.totalorder %s34, 0
      %p159 = por %p157, %p158
      %s161 = sadd.s32 %s160, 1
      %p164 = scmp.eq.s32.totalorder %s28, 3
      %p165 = scmp.ne.s32.totalorder %s160, %s162
      %p166 = scmp.eq.s32.totalorder %s28, 0
      %p167 = por %p165, %p166
      %p168 = scmp.ne.s32.totalorder %s160, %s162
      %p169 = scmp.eq.s32.totalorder %s33, 3
      %p170 = por %p168, %p169
      %p171 = scmp.ne.s32.totalorder %s162, %s163
      %p172 = scmp.eq.s32.totalorder %s33, 0
      %p173 = por %p171, %p172
      %p174 = scmp.ne.s32.totalorder %s162, %s163
      %p175 = scmp.eq.s32.totalorder %s34, 3
      %p176 = por %p174, %p175
      %p178 = scmp.ne.s32.totalorder %s163, %s177
      %p179 = scmp.eq.s32.totalorder %s34, 0
      %p180 = por %p178, %p179
      %s182 = sadd.s32 %s181, 1
      %p185 = scmp.eq.s32.totalorder %s28, 3
      %p186 = scmp.ne.s32.totalorder %s181, %s183
      %p187 = scmp.eq.s32.totalorder %s28, 0
      %p188 = por %p186, %p187
      %p189 = scmp.ne.s32.totalorder %s181, %s183
      %p190 = scmp.eq.s32.totalorder %s33, 3
      %p191 = por %p189, %p190
      %p192 = scmp.ne.s32.totalorder %s183, %s184
      %p193 = scmp.eq.s32.totalorder %s33, 0
      %p194 = por %p192, %p193
      %p195 = scmp.ne.s32.totalorder %s183, %s184
      %p196 = scmp.eq.s32.totalorder %s34, 3
      %p197 = por %p195, %p196
      %p199 = scmp.ne.s32.totalorder %s184, %s198
      %p200 = scmp.eq.s32.totalorder %s34, 0
      %p201 = por %p199, %p200
      %s202 = ssub.s32 %s35, %s47
      %s203 = ssub.s32 %s36, %s43
      %s204 = sor.u32 %s202, %s203
      %p205 = scmp.eq.s32.totalorder %s204, 0
      %s207 = sadd.s32 %s206, 1
      %s208 = scalar_select %p205, %s206, %s207
      %p211 = pneg %p205
      %p212 = scmp.eq.s32.totalorder %s28, 3
      %p213 = por %p211, %p212
      %p214 = scmp.ne.s32.totalorder %s206, %s209
      %p215 = scmp.eq.s32.totalorder %s28, 0
      %p216 = por %p214, %p215
      %p217 = scmp.ne.s32.totalorder %s206, %s209
      %p218 = scmp.eq.s32.totalorder %s33, 3
      %p219 = por %p217, %p218
      %p220 = scmp.ne.s32.totalorder %s209, %s210
      %p221 = scmp.eq.s32.totalorder %s33, 0
      %p222 = por %p220, %p221
      %p223 = scmp.ne.s32.totalorder %s209, %s210
      %p224 = scmp.eq.s32.totalorder %s34, 3
      %p225 = por %p223, %p224
      %p227 = scmp.ne.s32.totalorder %s210, %s226
      %p228 = scmp.eq.s32.totalorder %s34, 0
      %p229 = por %p227, %p228
      %s230 = ssub.s32 %s35, %s47
      %s231 = ssub.s32 %s36, %s43
      %s232 = sor.u32 %s230, %s231
      %p233 = scmp.eq.s32.totalorder %s232, 0
      %s235 = sadd.s32 %s234, 1
      %s236 = scalar_select %p233, %s234, %s235
      %p239 = pneg %p233
      %p240 = scmp.eq.s32.totalorder %s28, 3
      %p241 = por %p239, %p240
      %p242 = scmp.ne.s32.totalorder %s234, %s237
      %p243 = scmp.eq.s32.totalorder %s28, 0
      %p244 = por %p242, %p243
      %p245 = scmp.ne.s32.totalorder %s234, %s237
      %p246 = scmp.eq.s32.totalorder %s33, 3
      %p247 = por %p245, %p246
      %p248 = scmp.ne.s32.totalorder %s237, %s238
      %p249 = scmp.eq.s32.totalorder %s33, 0
      %p250 = por %p248, %p249
      %p251 = scmp.ne.s32.totalorder %s237, %s238
      %p252 = scmp.eq.s32.totalorder %s34, 3
      %p253 = por %p251, %p252
      %p255 = scmp.ne.s32.totalorder %s238, %s254
      %p256 = scmp.eq.s32.totalorder %s34, 0
      %p257 = por %p255, %p256
      %s258 = ssub.s32 %s35, %s47
      %s259 = ssub.s32 %s36, %s43
      %s260 = sor.u32 %s258, %s259
      %p261 = scmp.eq.s32.totalorder %s260, 0
      %s263 = sadd.s32 %s262, 1
      %s264 = scalar_select %p261, %s262, %s263
      %p267 = pneg %p261
      %p268 = scmp.eq.s32.totalorder %s28, 3
      %p269 = por %p267, %p268
      %p270 = scmp.ne.s32.totalorder %s262, %s265
      %p271 = scmp.eq.s32.totalorder %s28, 0
      %p272 = por %p270, %p271
      %p273 = scmp.ne.s32.totalorder %s262, %s265
      %p274 = scmp.eq.s32.totalorder %s33, 3
      %p275 = por %p273, %p274
      %p276 = scmp.ne.s32.totalorder %s265, %s266
      %p277 = scmp.eq.s32.totalorder %s33, 0
      %p278 = por %p276, %p277
      %p279 = scmp.ne.s32.totalorder %s265, %s266
      %p280 = scmp.eq.s32.totalorder %s34, 3
      %p281 = por %p279, %p280
      %p283 = scmp.ne.s32.totalorder %s266, %s282
      %p284 = scmp.eq.s32.totalorder %s34, 0
      %p285 = por %p283, %p284
      %p286 = scmp.le.s32.totalorder 1, %s28
      %p287 = scmp.lt.s32.totalorder %s28, 5
      %p288 = pnand %p286, %p287
      %p289 = pneg %p288
      // Predicated region
      $region9: #{tpu_custom_call.1} parent=5 // pred_check
        _
      $region10: #{tpu_custom_call.1} parent=5 // pred_check_branch
        %291 = sbr.rel (%p288) target = $region12
      $region11: #{tpu_custom_call.1} parent=5 // pred_region
        %s292 = ssub.s32 %s28, 1
        // Predicated region
        $region13: #{tpu_custom_call.1} parent=11 // pred_check
          %p293 = pneg %p89
        $region14: #{tpu_custom_call.1} parent=11 // pred_check_branch
          %295 = sbr.rel (%p293) target = $region16
        $region15: #{tpu_custom_call.1} parent=11 // pred_region
          %s297 = ssub.s32 256, 256
          %298 = vsyncadd [#allocation6], %s297
          %s299 = sshll.u32 [#allocation5], 4
          %s300 = int_to_ptr.vmem [resolvable:$true] %s299
          %305 = dma.hbm_to_vmem [thread:$0]  %s1, 256, %s300, [#allocation6], 64, 64, 4
        $region16: #{tpu_custom_call.1} parent=11 // pred_fallthru
          _
        // Predicated region
        $region17: #{tpu_custom_call.1} parent=11 // pred_check
          %p306 = pneg %p110
        $region18: #{tpu_custom_call.1} parent=11 // pred_check_branch
          %308 = sbr.rel (%p306) target = $region20
        $region19: #{tpu_custom_call.1} parent=11 // pred_region
          %s310 = ssub.s32 16, 16
          %311 = vsyncadd [#allocation6], %s310
          %s313 = sshll.u32 [#allocation7], 4
          %s314 = int_to_ptr.vmem [resolvable:$true] %s313
          %316 = dma.hbm_to_vmem [thread:$0]  %s2, 16, %s314, [#allocation6]
        $region20: #{tpu_custom_call.1} parent=11 // pred_fallthru
          _
        // Predicated region
        $region21: #{tpu_custom_call.1} parent=11 // pred_check
          %p317 = pneg %p131
        $region22: #{tpu_custom_call.1} parent=11 // pred_check_branch
          %319 = sbr.rel (%p317) target = $region24
        $region23: #{tpu_custom_call.1} parent=11 // pred_region
          %s321 = ssub.s32 256, 256
          %322 = vsyncadd [#allocation9], %s321
          %s323 = sshll.u32 [#allocation8], 4
          %s324 = int_to_ptr.vmem [resolvable:$true] %s323
          %329 = dma.hbm_to_vmem [thread:$0]  %s3, 256, %s324, [#allocation9], 64, 64, 4
        $region24: #{tpu_custom_call.1} parent=11 // pred_fallthru
          _
        // Predicated region
        $region25: #{tpu_custom_call.1} parent=11 // pred_check
          %p330 = pneg %p152
        $region26: #{tpu_custom_call.1} parent=11 // pred_check_branch
          %332 = sbr.rel (%p330) target = $region28
        $region27: #{tpu_custom_call.1} parent=11 // pred_region
          %s334 = ssub.s32 16, 16
          %335 = vsyncadd [#allocation9], %s334
          %s337 = sshll.u32 [#allocation10], 4
          %s338 = int_to_ptr.vmem [resolvable:$true] %s337
          %340 = dma.hbm_to_vmem [thread:$0]  %s4, 16, %s338, [#allocation9]
        $region28: #{tpu_custom_call.1} parent=11 // pred_fallthru
          _
        // Predicated region
        $region29: #{tpu_custom_call.1} parent=11 // pred_check
          %p341 = pneg %p173
        $region30: #{tpu_custom_call.1} parent=11 // pred_check_branch
          %343 = sbr.rel (%p341) target = $region32
        $region31: #{tpu_custom_call.1} parent=11 // pred_region
          %s345 = ssub.s32 256, 256
          %346 = vsyncadd [#allocation12], %s345
          %s347 = sshll.u32 [#allocation11], 4
          %s348 = int_to_ptr.vmem [resolvable:$true] %s347
          %353 = dma.hbm_to_vmem [thread:$0]  %s5, 256, %s348, [#allocation12], 64, 64, 4
        $region32: #{tpu_custom_call.1} parent=11 // pred_fallthru
          _
        // Predicated region
        $region33: #{tpu_custom_call.1} parent=11 // pred_check
          %p354 = pneg %p194
        $region34: #{tpu_custom_call.1} parent=11 // pred_check_branch
          %356 = sbr.rel (%p354) target = $region36
        $region35: #{tpu_custom_call.1} parent=11 // pred_region
          %s358 = ssub.s32 16, 16
          %359 = vsyncadd [#allocation12], %s358
          %s361 = sshll.u32 [#allocation13], 4
          %s362 = int_to_ptr.vmem [resolvable:$true] %s361
          %364 = dma.hbm_to_vmem [thread:$0]  %s6, 16, %s362, [#allocation12]
        $region36: #{tpu_custom_call.1} parent=11 // pred_fallthru
          _
      $region12: #{tpu_custom_call.1} parent=5 // pred_fallthru
        _
      %p365 = scmp.lt.s32.totalorder %s28, 4
      // Predicated region
      $region37: #{tpu_custom_call.1} parent=5 // pred_check
        %p366 = pneg %p365
      $region38: #{tpu_custom_call.1} parent=5 // pred_check_branch
        %368 = sbr.rel (%p366) target = $region40
      $region39: #{tpu_custom_call.1} parent=5 // pred_region
        // Predicated region
        $region41: #{tpu_custom_call.1} parent=39 // pred_check
          %p369 = pneg %p62
        $region42: #{tpu_custom_call.1} parent=39 // pred_check_branch
          %371 = sbr.rel (%p369) target = $region44
        $region43: #{tpu_custom_call.1} parent=39 // pred_region
          %s372 = sand.u32 %s52, 1
          %s373 = scalar_lea.sflag [#allocation3], %s372
          %s374 = sand.u32 %s52, 1
          %s375 = smul.addr %s374, 4
          %s376 = scalar_lea.vmem [#allocation2], %s375
          %s378 = ssub.s32 64, 64
          %379 = vsyncadd %s373, %s378
          %s380 = smul.addr %s35, 2
          %s381 = sadd.s32 %s36, %s380
          %s382 = smul.addr %s381, 64
          %s383 = scalar_lea.hbm %s0, %s382
          %s385 = sshll.u32 %s376, 4
          %s386 = int_to_ptr.vmem [resolvable:$true] %s385
          %388 = dma.hbm_to_vmem [thread:$0]  %s383, 64, %s386, %s373
        $region44: #{tpu_custom_call.1} parent=39 // pred_fallthru
          _
      $region40: #{tpu_custom_call.1} parent=5 // pred_fallthru
        _
      %p389 = scmp.le.s32.totalorder 1, %s28
      %p390 = scmp.lt.s32.totalorder %s28, 5
      %p391 = pnand %p389, %p390
      %p392 = pneg %p391
      // Predicated region
      $region45: #{tpu_custom_call.1} parent=5 // pred_check
        _
      $region46: #{tpu_custom_call.1} parent=5 // pred_check_branch
        %394 = sbr.rel (%p391) target = $region48
      $region47: #{tpu_custom_call.1} parent=5 // pred_region
        %s395 = ssub.s32 %s28, 1
        %s396 = sand.u32 %s55, 1
        %s397 = scalar_lea.sflag [#allocation3], %s396
        %s398 = sand.u32 %s55, 1
        %s399 = smul.addr %s398, 4
        %s400 = scalar_lea.vmem [#allocation2], %s399
        // Predicated region
        $region49: #{tpu_custom_call.1} parent=47 // pred_check
          %p401 = pneg %p68
        $region50: #{tpu_custom_call.1} parent=47 // pred_check_branch
          %403 = sbr.rel (%p401) target = $region52
        $region51: #{tpu_custom_call.1} parent=47 // pred_region
          %404 = dma.done %s397, 64
        $region52: #{tpu_custom_call.1} parent=47 // pred_fallthru
          _
        // Predicated region
        $region53: #{tpu_custom_call.1} parent=47 // pred_check
          %p405 = pneg %p89
        $region54: #{tpu_custom_call.1} parent=47 // pred_check_branch
          %407 = sbr.rel (%p405) target = $region56
        $region55: #{tpu_custom_call.1} parent=47 // pred_region
          %408 = dma.done [#allocation6], 256
        $region56: #{tpu_custom_call.1} parent=47 // pred_fallthru
          _
        // Predicated region
        $region57: #{tpu_custom_call.1} parent=47 // pred_check
          %p409 = pneg %p110
        $region58: #{tpu_custom_call.1} parent=47 // pred_check_branch
          %411 = sbr.rel (%p409) target = $region60
        $region59: #{tpu_custom_call.1} parent=47 // pred_region
          %412 = dma.done [#allocation6], 16
        $region60: #{tpu_custom_call.1} parent=47 // pred_fallthru
          _
        // Predicated region
        $region61: #{tpu_custom_call.1} parent=47 // pred_check
          %p413 = pneg %p131
        $region62: #{tpu_custom_call.1} parent=47 // pred_check_branch
          %415 = sbr.rel (%p413) target = $region64
        $region63: #{tpu_custom_call.1} parent=47 // pred_region
          %416 = dma.done [#allocation9], 256
        $region64: #{tpu_custom_call.1} parent=47 // pred_fallthru
          _
        // Predicated region
        $region65: #{tpu_custom_call.1} parent=47 // pred_check
          %p417 = pneg %p152
        $region66: #{tpu_custom_call.1} parent=47 // pred_check_branch
          %419 = sbr.rel (%p417) target = $region68
        $region67: #{tpu_custom_call.1} parent=47 // pred_region
          %420 = dma.done [#allocation9], 16
        $region68: #{tpu_custom_call.1} parent=47 // pred_fallthru
          _
        // Predicated region
        $region69: #{tpu_custom_call.1} parent=47 // pred_check
          %p421 = pneg %p173
        $region70: #{tpu_custom_call.1} parent=47 // pred_check_branch
          %423 = sbr.rel (%p421) target = $region72
        $region71: #{tpu_custom_call.1} parent=47 // pred_region
          %424 = dma.done [#allocation12], 256
        $region72: #{tpu_custom_call.1} parent=47 // pred_fallthru
          _
        // Predicated region
        $region73: #{tpu_custom_call.1} parent=47 // pred_check
          %p425 = pneg %p194
        $region74: #{tpu_custom_call.1} parent=47 // pred_check_branch
          %427 = sbr.rel (%p425) target = $region76
        $region75: #{tpu_custom_call.1} parent=47 // pred_region
          %428 = dma.done [#allocation12], 16
        $region76: #{tpu_custom_call.1} parent=47 // pred_fallthru
          _
        %s429 = sand.u32 %s55, 1
        %s430 = scalar_lea.sflag [#allocation3], %s429
        %s431 = sand.u32 %s55, 1
        %s432 = smul.addr %s431, 4
        %s433 = scalar_lea.vmem [#allocation2], %s432
        %p434 = pneg %p68
        %p435 = pneg %p65
        %p436 = pneg %p89
        %p437 = pneg %p86
        %p438 = pneg %p110
        %p439 = pneg %p107
        %p440 = pneg %p131
        %p441 = pneg %p128
        %p442 = pneg %p152
        %p443 = pneg %p149
        %p444 = pneg %p173
        %p445 = pneg %p170
        %p446 = pneg %p194
        %p447 = pneg %p191
        %p448 = pneg %p222
        %p449 = pneg %p219
        %s450 = sand.u32 %s209, 1
        %s451 = scalar_lea.sflag [#allocation4], %s450
        %s452 = sand.u32 %s209, 1
        %s453 = smul.addr %s452, 4
        %s454 = scalar_lea.vmem [#allocation14], %s453
        %p455 = pneg %p250
        %p456 = pneg %p247
        %s457 = sand.u32 %s33, 1
        %s458 = scalar_lea.sflag [#allocation16], %s457
        %s459 = sand.u32 %s237, 1
        %s460 = smul.addr %s459, 4
        %s461 = scalar_lea.vmem [#allocation15], %s460
        %p462 = pneg %p278
        %p463 = pneg %p275
        %s464 = sand.u32 %s33, 1
        %s465 = scalar_lea.sflag [#allocation16], %s464
        %s466 = sand.u32 %s265, 1
        %s467 = smul.addr %s466, 4
        %s468 = scalar_lea.vmem [#allocation17], %s467
        %v470 = vld [vmem:[%s400] sm:$0xf]
        %v471 = vld [vmem:[#allocation5] sm:$0xf]
        %v472 = vld [vmem:[#allocation5 + $0x4] sm:$0xf]
        %v473 = vld [vmem:[#allocation5 + $0x8] sm:$0xf]
        %v474 = vld [vmem:[#allocation5 + $0xc] sm:$0xf]
        %v475 = vld [vmem:[#allocation7] sm:$0x1]
        %v477 = vlaneseq
        %v478 = vshrl.u32 %v477, 7
        %v479 = vsub.s32 0, %v478
        %v480 = vrot.slane %v475, %v479
        %v486 = vunpack.c.l.b16 %v471
        %v487 = vunpack.c.l.b16 %v472
        %v488 = vunpack.c.l.b16 %v473
        %v489 = vunpack.c.l.b16 %v474
        %v490 = vpack.c.b16 %v487, %v486
        %v491 = vpack.c.b16 %v489, %v488
        %vm494 = vcmask 261120
        %v496 = vsel %vm494, %v470, 0
        %498 = vmatprep.subr.bf16.mxu0 0
        %499 = vmatpush1.bf16.msra.mxu0 %v490
        %500 = vmatprep.subr.bf16.mxu0 0
        %501 = vmatpush1.bf16.msra.mxu0 %v491
        %502 = vmatprep.subr.bf16.mxu0 0
        %503 = vmatpush1.bf16.msra.mxu0 0
        %504 = vmatprep.subr.bf16.mxu0 0
        %505 = vmatpush1.bf16.msra.mxu0 0
        %506 = vmatprep.subr.bf16.mxu0 0
        %507 = vmatpush1.bf16.msra.mxu0 0
        %508 = vmatprep.subr.bf16.mxu0 0
        %509 = vmatpush1.bf16.msra.mxu0 0
        %510 = vmatprep.subr.bf16.mxu0 0
        %511 = vmatpush1.bf16.msra.mxu0 0
        %512 = vmatprep.subr.bf16.mxu0 0
        %513 = vmatpush1.bf16.msra.mxu0 0
        %514 = vmatprep.subr.bf16.mxu0 0
        %515 = vmatpush1.bf16.msra.mxu0 0
        %516 = vmatprep.subr.bf16.mxu0 0
        %517 = vmatpush1.bf16.msra.mxu0 0
        %518 = vmatprep.subr.bf16.mxu0 0
        %519 = vmatpush1.bf16.msra.mxu0 0
        %520 = vmatprep.subr.bf16.mxu0 0
        %521 = vmatpush1.bf16.msra.mxu0 0
        %522 = vmatprep.subr.bf16.mxu0 0
        %523 = vmatpush1.bf16.msra.mxu0 0
        %524 = vmatprep.subr.bf16.mxu0 0
        %525 = vmatpush1.bf16.msra.mxu0 0
        %526 = vmatprep.subr.bf16.mxu0 0
        %527 = vmatpush1.bf16.msra.mxu0 0
        %528 = vmatprep.subr.bf16.mxu0 0
        %529 = vmatpush1.bf16.msra.mxu0 0
        %530 = vmatprep.mubr.bf16.mxu0 0
        %531 = vmatmul.mubr.bf16.gmra.mrb[0].mxu0 %v496
        %v532 = vpop.f32.mrb[0].mxu0
        %v533 = vadd.f32 %v480, %v532
        %v534 = vpop.f32.mrb[0].mxu0
        %v535 = vpop.f32.mrb[0].mxu0
        %v536 = vpop.f32.mrb[0].mxu0
        %537 = vdwg.mxu0
        %v538 = vld [vmem:[#allocation8] sm:$0xf]
        %v539 = vld [vmem:[#allocation8 + $0x4] sm:$0xf]
        %v540 = vld [vmem:[#allocation8 + $0x8] sm:$0xf]
        %v541 = vld [vmem:[#allocation8 + $0xc] sm:$0xf]
        %v542 = vld [vmem:[#allocation10] sm:$0x1]
        %v544 = vlaneseq
        %v545 = vshrl.u32 %v544, 7
        %v546 = vsub.s32 0, %v545
        %v547 = vrot.slane %v542, %v546
        %v553 = vunpack.c.l.b16 %v538
        %v554 = vunpack.c.l.b16 %v539
        %v555 = vunpack.c.l.b16 %v540
        %v556 = vunpack.c.l.b16 %v541
        %v557 = vpack.c.b16 %v554, %v553
        %v558 = vpack.c.b16 %v556, %v555
        %561 = vmatprep.subr.bf16.mxu0 0
        %562 = vmatpush1.bf16.msra.mxu0 %v557
        %563 = vmatprep.subr.bf16.mxu0 0
        %564 = vmatpush1.bf16.msra.mxu0 %v558
        %565 = vmatprep.subr.bf16.mxu0 0
        %566 = vmatpush1.bf16.msra.mxu0 0
        %567 = vmatprep.subr.bf16.mxu0 0
        %568 = vmatpush1.bf16.msra.mxu0 0
        %569 = vmatprep.subr.bf16.mxu0 0
        %570 = vmatpush1.bf16.msra.mxu0 0
        %571 = vmatprep.subr.bf16.mxu0 0
        %572 = vmatpush1.bf16.msra.mxu0 0
        %573 = vmatprep.subr.bf16.mxu0 0
        %574 = vmatpush1.bf16.msra.mxu0 0
        %575 = vmatprep.subr.bf16.mxu0 0
        %576 = vmatpush1.bf16.msra.mxu0 0
        %577 = vmatprep.subr.bf16.mxu0 0
        %578 = vmatpush1.bf16.msra.mxu0 0
        %579 = vmatprep.subr.bf16.mxu0 0
        %580 = vmatpush1.bf16.msra.mxu0 0
        %581 = vmatprep.subr.bf16.mxu0 0
        %582 = vmatpush1.bf16.msra.mxu0 0
        %583 = vmatprep.subr.bf16.mxu0 0
        %584 = vmatpush1.bf16.msra.mxu0 0
        %585 = vmatprep.subr.bf16.mxu0 0
        %586 = vmatpush1.bf16.msra.mxu0 0
        %587 = vmatprep.subr.bf16.mxu0 0
        %588 = vmatpush1.bf16.msra.mxu0 0
        %589 = vmatprep.subr.bf16.mxu0 0
        %590 = vmatpush1.bf16.msra.mxu0 0
        %591 = vmatprep.subr.bf16.mxu0 0
        %592 = vmatpush1.bf16.msra.mxu0 0
        %593 = vmatprep.mubr.bf16.mxu0 0
        %594 = vmatmul.mubr.bf16.gmra.mrb[0].mxu0 %v496
        %v595 = vpop.f32.mrb[0].mxu0
        %v596 = vadd.f32 %v547, %v595
        %v597 = vpop.f32.mrb[0].mxu0
        %v598 = vpop.f32.mrb[0].mxu0
        %v599 = vpop.f32.mrb[0].mxu0
        %600 = vdwg.mxu0
        %v601 = vld [vmem:[#allocation11] sm:$0xf]
        %v602 = vld [vmem:[#allocation11 + $0x4] sm:$0xf]
        %v603 = vld [vmem:[#allocation11 + $0x8] sm:$0xf]
        %v604 = vld [vmem:[#allocation11 + $0xc] sm:$0xf]
        %v605 = vld [vmem:[#allocation13] sm:$0x1]
        %v607 = vlaneseq
        %v608 = vshrl.u32 %v607, 7
        %v609 = vsub.s32 0, %v608
        %v610 = vrot.slane %v605, %v609
        %v616 = vunpack.c.l.b16 %v601
        %v617 = vunpack.c.l.b16 %v602
        %v618 = vunpack.c.l.b16 %v603
        %v619 = vunpack.c.l.b16 %v604
        %v620 = vpack.c.b16 %v617, %v616
        %v621 = vpack.c.b16 %v619, %v618
        %624 = vmatprep.subr.bf16.mxu0 0
        %625 = vmatpush1.bf16.msra.mxu0 %v620
        %626 = vmatprep.subr.bf16.mxu0 0
        %627 = vmatpush1.bf16.msra.mxu0 %v621
        %628 = vmatprep.subr.bf16.mxu0 0
        %629 = vmatpush1.bf16.msra.mxu0 0
        %630 = vmatprep.subr.bf16.mxu0 0
        %631 = vmatpush1.bf16.msra.mxu0 0
        %632 = vmatprep.subr.bf16.mxu0 0
        %633 = vmatpush1.bf16.msra.mxu0 0
        %634 = vmatprep.subr.bf16.mxu0 0
        %635 = vmatpush1.bf16.msra.mxu0 0
        %636 = vmatprep.subr.bf16.mxu0 0
        %637 = vmatpush1.bf16.msra.mxu0 0
        %638 = vmatprep.subr.bf16.mxu0 0
        %639 = vmatpush1.bf16.msra.mxu0 0
        %640 = vmatprep.subr.bf16.mxu0 0
        %641 = vmatpush1.bf16.msra.mxu0 0
        %642 = vmatprep.subr.bf16.mxu0 0
        %643 = vmatpush1.bf16.msra.mxu0 0
        %644 = vmatprep.subr.bf16.mxu0 0
        %645 = vmatpush1.bf16.msra.mxu0 0
        %646 = vmatprep.subr.bf16.mxu0 0
        %647 = vmatpush1.bf16.msra.mxu0 0
        %648 = vmatprep.subr.bf16.mxu0 0
        %649 = vmatpush1.bf16.msra.mxu0 0
        %650 = vmatprep.subr.bf16.mxu0 0
        %651 = vmatpush1.bf16.msra.mxu0 0
        %652 = vmatprep.subr.bf16.mxu0 0
        %653 = vmatpush1.bf16.msra.mxu0 0
        %654 = vmatprep.subr.bf16.mxu0 0
        %655 = vmatpush1.bf16.msra.mxu0 0
        %656 = vmatprep.mubr.bf16.mxu0 0
        %657 = vmatmul.mubr.bf16.gmra.mrb[0].mxu0 %v496
        %v658 = vpop.f32.mrb[0].mxu0
        %v659 = vadd.f32 %v610, %v658
        %v660 = vpop.f32.mrb[0].mxu0
        %v661 = vpop.f32.mrb[0].mxu0
        %v662 = vpop.f32.mrb[0].mxu0
        %663 = vdwg.mxu0
        %v664 = vpack.c.bf16 %v533, %v533
        %vm665 = vcmask 257024
        %666 = vst.msk [vmem:[%s454] sm:$0xf] %vm665, %v664
        %v667 = vpack.c.bf16 %v596, %v596
        %668 = vst.msk [vmem:[%s461] sm:$0xf] %vm665, %v667
        %v669 = vpack.c.bf16 %v659, %v659
        %670 = vst.msk [vmem:[%s468] sm:$0xf] %vm665, %v669
        %s671 = sand.u32 %s209, 1
        %s672 = scalar_lea.sflag [#allocation4], %s671
        %s673 = sand.u32 %s209, 1
        %s674 = smul.addr %s673, 4
        %s675 = scalar_lea.vmem [#allocation14], %s674
        %s676 = sand.u32 %s33, 1
        %s677 = scalar_lea.sflag [#allocation16], %s676
        %s678 = sand.u32 %s237, 1
        %s679 = smul.addr %s678, 4
        %s680 = scalar_lea.vmem [#allocation15], %s679
        %s681 = sand.u32 %s33, 1
        %s682 = scalar_lea.sflag [#allocation16], %s681
        %s683 = sand.u32 %s265, 1
        %s684 = smul.addr %s683, 4
        %s685 = scalar_lea.vmem [#allocation17], %s684
        // Predicated region
        $region77: #{tpu_custom_call.1} parent=47 // pred_check
          %p686 = pneg %p219
        $region78: #{tpu_custom_call.1} parent=47 // pred_check_branch
          %688 = sbr.rel (%p686) target = $region80
        $region79: #{tpu_custom_call.1} parent=47 // pred_region
          %s690 = ssub.s32 64, 64
          %691 = vsyncadd %s672, %s690
          %s692 = smul.addr %s37, 2
          %s693 = sadd.s32 %s38, %s692
          %s694 = smul.addr %s693, 64
          %s695 = scalar_lea.hbm %s7, %s694
          %s697 = sshll.u32 %s675, 4
          %s698 = int_to_ptr.vmem [resolvable:$true] %s697
          %700 = dma.vmem_to_hbm [thread:$0]  %s698, 64, %s695, %s672
        $region80: #{tpu_custom_call.1} parent=47 // pred_fallthru
          _
        // Predicated region
        $region81: #{tpu_custom_call.1} parent=47 // pred_check
          %p701 = pneg %p247
        $region82: #{tpu_custom_call.1} parent=47 // pred_check_branch
          %703 = sbr.rel (%p701) target = $region84
        $region83: #{tpu_custom_call.1} parent=47 // pred_region
          %s705 = ssub.s32 64, 64
          %706 = vsyncadd %s677, %s705
          %s707 = smul.addr %s37, 2
          %s708 = sadd.s32 %s38, %s707
          %s709 = smul.addr %s708, 64
          %s710 = scalar_lea.hbm %s8, %s709
          %s712 = sshll.u32 %s680, 4
          %s713 = int_to_ptr.vmem [resolvable:$true] %s712
          %715 = dma.vmem_to_hbm [thread:$0]  %s713, 64, %s710, %s677
        $region84: #{tpu_custom_call.1} parent=47 // pred_fallthru
          _
        // Predicated region
        $region85: #{tpu_custom_call.1} parent=47 // pred_check
          %p716 = pneg %p275
        $region86: #{tpu_custom_call.1} parent=47 // pred_check_branch
          %718 = sbr.rel (%p716) target = $region88
        $region87: #{tpu_custom_call.1} parent=47 // pred_region
          %s720 = ssub.s32 64, 64
          %721 = vsyncadd %s682, %s720
          %s722 = smul.addr %s37, 2
          %s723 = sadd.s32 %s38, %s722
          %s724 = smul.addr %s723, 64
          %s725 = scalar_lea.hbm %s9, %s724
          %s727 = sshll.u32 %s685, 4
          %s728 = int_to_ptr.vmem [resolvable:$true] %s727
          %730 = dma.vmem_to_hbm [thread:$0]  %s728, 64, %s725, %s682
        $region88: #{tpu_custom_call.1} parent=47 // pred_fallthru
          _
      $region48: #{tpu_custom_call.1} parent=5 // pred_fallthru
        _
      %p731 = scmp.le.s32.totalorder 2, %s28
      // Predicated region
      $region89: #{tpu_custom_call.1} parent=5 // pred_check
        %p732 = pneg %p731
      $region90: #{tpu_custom_call.1} parent=5 // pred_check_branch
        %734 = sbr.rel (%p732) target = $region92
      $region91: #{tpu_custom_call.1} parent=5 // pred_region
        %s735 = ssub.s32 %s28, 2
        // Predicated region
        $region93: #{tpu_custom_call.1} parent=91 // pred_check
          %p736 = pneg %p225
        $region94: #{tpu_custom_call.1} parent=91 // pred_check_branch
          %738 = sbr.rel (%p736) target = $region96
        $region95: #{tpu_custom_call.1} parent=91 // pred_region
          %s739 = sand.u32 %s210, 1
          %s740 = scalar_lea.sflag [#allocation4], %s739
          %s741 = sand.u32 %s210, 1
          %s742 = smul.addr %s741, 4
          %s743 = scalar_lea.vmem [#allocation14], %s742
          %744 = dma.done %s740, 64
        $region96: #{tpu_custom_call.1} parent=91 // pred_fallthru
          _
        // Predicated region
        $region97: #{tpu_custom_call.1} parent=91 // pred_check
          %p745 = pneg %p253
        $region98: #{tpu_custom_call.1} parent=91 // pred_check_branch
          %747 = sbr.rel (%p745) target = $region100
        $region99: #{tpu_custom_call.1} parent=91 // pred_region
          %s748 = sand.u32 %s34, 1
          %s749 = scalar_lea.sflag [#allocation16], %s748
          %s750 = sand.u32 %s238, 1
          %s751 = smul.addr %s750, 4
          %s752 = scalar_lea.vmem [#allocation15], %s751
          %753 = dma.done %s749, 64
        $region100: #{tpu_custom_call.1} parent=91 // pred_fallthru
          _
        // Predicated region
        $region101: #{tpu_custom_call.1} parent=91 // pred_check
          %p754 = pneg %p281
        $region102: #{tpu_custom_call.1} parent=91 // pred_check_branch
          %756 = sbr.rel (%p754) target = $region104
        $region103: #{tpu_custom_call.1} parent=91 // pred_region
          %s757 = sand.u32 %s34, 1
          %s758 = scalar_lea.sflag [#allocation16], %s757
          %s759 = sand.u32 %s266, 1
          %s760 = smul.addr %s759, 4
          %s761 = scalar_lea.vmem [#allocation17], %s760
          %762 = dma.done %s758, 64
        $region104: #{tpu_custom_call.1} parent=91 // pred_fallthru
          _
      $region92: #{tpu_custom_call.1} parent=5 // pred_fallthru
        _
    $region6: #{tpu_custom_call.1} parent=1 // loop_footer
      %s32 = sadd.s32 1, %s28
    $region7: #{tpu_custom_call.1} parent=1 // loop_footer_branch
      %27 = sbr.rel target = $region3
    $region8: #{tpu_custom_call.1} parent=1 // loop_exit
      _
    %763 = vsyncpa [#allocation3], 1
    %s764 = scalar_lea.sflag [#allocation3], 1
    %765 = vsyncpa %s764, 1
    %766 = vsyncpa [#allocation6], 1
    %767 = vsyncpa [#allocation9], 1
    %768 = vsyncpa [#allocation12], 1
    %769 = vsyncpa [#allocation4], 1
    %s770 = scalar_lea.sflag [#allocation4], 1
    %771 = vsyncpa %s770, 1
    %772 = vsyncpa [#allocation16], 1
    %s773 = scalar_lea.sflag [#allocation16], 1
    %774 = vsyncpa %s773, 1

</llo_original>
